<compile_context>
chip_gen: v7x
topology: tpu7x:2x2x1
jax: 0.10.0
libtpu: 0.0.40
codegen_flags: <defaults>
</compile_context>

<pallas_src>
import math

import jax
import jax.numpy as jnp
from jax.experimental import pallas as pl
from jax.experimental.pallas import tpu as pltpu


LANES = 128
DEFAULT_TM = 8192      # original x rows per grid step (sweepable)


def _round_up(x: int, m: int) -> int:
    return (x + m - 1) // m * m


def listnet_kernel(x_ref, w1_ref, b1_ref, w2_ref, b2_ref, o_ref):
    # Layer 1, canonical MXU matmul: (TMp, P*F) @ (P*F, P*H) -> (TMp, P*H), f32 acc.
    h = jnp.dot(x_ref[...], w1_ref[...], preferred_element_type=jnp.float32)
    # Bias + ReLU on the VPU in f32.
    h = jnp.maximum(h + b1_ref[...], 0.0)
    # Layer 2, canonical: (TMp, P*H) @ (P*H, P) -> (TMp, P).  Column p holds the
    # score of packed sub-row p.  No transpose of h anywhere.
    s = jnp.dot(h, w2_ref[...], preferred_element_type=jnp.float32)
    o_ref[...] = (s + b2_ref[0]).astype(o_ref.dtype)


def listnet_forward(x, w1, b1, w2, b2, *, tm: int = DEFAULT_TM):
    """ListNet forward.  x: (N, F) -> (N, 1) float32 scores.

    x is streamed in the dtype it arrives in (pass bf16 from upstream to halve
    HBM read traffic); accumulation, bias, ReLU and layer 2 stay float32.
    """
    n, f = x.shape
    h_dim = w1.shape[1]
    assert w1.shape == (f, h_dim)

    # Lane packing factor: P consecutive rows share the 128-lane axis.
    p = max(1, LANES // f) if f <= LANES else 1
    # Keep the packed hidden width (and the resident block-diag W1) bounded.
    p = max(1, min(p, 2048 // max(h_dim, 1)))

    # Align the batch to 8*P rows (< 8*P pad rows, only when not already
    # aligned) so the packed view tiles exactly and no block overhangs the
    # array.  Padded rows are sliced off at the end.
    align = 8 * p
    n_pad = _round_up(max(n, 1), align)
    if n_pad != n:
        x = jnp.pad(x, ((0, n_pad - n), (0, 0)))
    rows = n_pad // p
    pf, ph = p * f, p * h_dim
    x_p = x.reshape(rows, pf)                       # free row-major bitcast view

    # Packed resident weights (tiny; built once per call, cast to x's dtype).
    f32 = jnp.float32
    eye = jnp.eye(p, dtype=f32)
    w1_bd = jnp.kron(eye, w1.astype(f32)).astype(x.dtype)          # (P*F, P*H)
    w2_bd = jnp.kron(eye, w2.reshape(h_dim, 1).astype(f32))        # (P*H, P), f32
    b1_t = jnp.tile(b1.astype(f32).reshape(1, h_dim), (1, p))      # (1, P*H)
    b2_s = jnp.asarray(b2, dtype=f32).reshape((1,))                # SMEM scalar

    # Packed-row tile: big enough to amortize ~0.35us/step, small enough to
    # keep ~8 grid steps (v7x 2-TC sharding), never below 512 packed rows, and
    # never above the array (no overhanging blocks).
    tmp = max(8, _round_up(max(tm, align) // p, 8))
    tmp = min(tmp, max(512, _round_up(pl.cdiv(rows, 8), 8)))
    tmp = max(8, min(tmp, rows))
    grid = (pl.cdiv(rows, tmp),)

    out = pl.pallas_call(
        listnet_kernel,
        out_shape=jax.ShapeDtypeStruct((rows, p), jnp.float32),
        grid=grid,
        in_specs=[
            pl.BlockSpec((tmp, pf), lambda i: (i, 0)),             # streamed x tile
            pl.BlockSpec((pf, ph), lambda i: (0, 0)),              # resident W1 (block-diag)
            pl.BlockSpec((1, ph), lambda i: (0, 0)),               # resident b1 (tiled)
            pl.BlockSpec((ph, p), lambda i: (0, 0)),               # resident w2 (block-diag)
            pl.BlockSpec(memory_space=pltpu.MemorySpace.SMEM),     # b2 scalar
        ],
        out_specs=pl.BlockSpec((tmp, p), lambda i: (i, 0)),
        compiler_params=pltpu.CompilerParams(
            dimension_semantics=("parallel",),    # v7x: shard steps across both TCs
            vmem_limit_bytes=32 * 1024 * 1024,    # headroom if tm is raised further
        ),
    )(x_p, w1_bd, b1_t, w2_bd, b2_s)

    # (rows, P) row-major == (n_pad, 1); drop padded rows before any softmax.
    return out.reshape(n_pad, 1)[:n]


def init_listnet_params(key, num_input_features, hidden_dim):
    """Deterministic init mirroring torch.nn.Linear default U[-1/sqrt(fan_in), 1/sqrt(fan_in)]."""
    k1, k2, k3, k4 = jax.random.split(key, 4)
    bound1 = 1.0 / math.sqrt(num_input_features)
    bound2 = 1.0 / math.sqrt(hidden_dim)
    w1 = jax.random.uniform(k1, (num_input_features, hidden_dim),
                            minval=-bound1, maxval=bound1, dtype=jnp.float32)
    b1 = jax.random.uniform(k2, (hidden_dim,),
                            minval=-bound1, maxval=bound1, dtype=jnp.float32)
    w2 = jax.random.uniform(k3, (hidden_dim, 1),
                            minval=-bound2, maxval=bound2, dtype=jnp.float32)
    b2 = jax.random.uniform(k4, (1,),
                            minval=-bound2, maxval=bound2, dtype=jnp.float32)
    return w1, b1, w2, b2


if __name__ == "__main__":
    num_input_features = 32
    hidden_dim = 32
    batch = 8  # number of documents to score

    key = jax.random.PRNGKey(0)
    k_x, k_p = jax.random.split(key)
    x = jax.random.normal(k_x, (batch, num_input_features), dtype=jnp.float32)
    w1, b1, w2, b2 = init_listnet_params(k_p, num_input_features, hidden_dim)

    # Pure-JAX reference.
    ref = jnp.maximum(x @ w1 + b1, 0.0) @ w2 + b2

    # f32 path.
    out = jax.block_until_ready(listnet_forward(x, w1, b1, w2, b2))
    assert out.shape == (batch, 1)
    assert jnp.allclose(out, ref, atol=1e-4, rtol=1e-4)

    # Ragged batch (exercises the <8*P-row alignment pad + output slice).
    x2 = jax.random.normal(k_x, (37, num_input_features), dtype=jnp.float32)
    ref2 = jnp.maximum(x2 @ w1 + b1, 0.0) @ w2 + b2
    out2 = jax.block_until_ready(listnet_forward(x2, w1, b1, w2, b2))
    assert out2.shape == (37, 1)
    assert jnp.allclose(out2, ref2, atol=1e-4, rtol=1e-4)

    # bf16-streaming path: x already arrives in bf16 (upstream cast), weights follow.
    out_bf16 = jax.block_until_ready(
        listnet_forward(x.astype(jnp.bfloat16), w1, b1, w2, b2))
    assert out_bf16.shape == (batch, 1)
    assert jnp.allclose(out_bf16, ref, atol=5e-2, rtol=5e-2)

    print("KERNEL_OK")
</pallas_src>

<mosaic_0001>
module attributes {stable_mosaic.version = 11 : i64} {
  func.func @listnet_kernel(%arg0: i32, %arg1: memref<8x128xf32, #tpu.memory_space<vmem>>, %arg2: memref<128x128xf32, #tpu.memory_space<vmem>>, %arg3: memref<1x128xf32, #tpu.memory_space<vmem>>, %arg4: memref<128x4xf32, #tpu.memory_space<vmem>>, %arg5: memref<1xf32, #tpu.memory_space<smem>>, %arg6: memref<8x4xf32, #tpu.memory_space<vmem>>) attributes {dimension_semantics = [#tpu.dimension_semantics<parallel>], iteration_bounds = array<i64: 1>, scalar_prefetch = 0 : i64, scratch_operands = 0 : i64, tpu.core_type = #tpu.core_type<tc>, window_params = [{transform_indices = @transform_0, window_bounds = array<i64: 8, 128>}, {pipeline_mode = #tpu.pipeline_mode<synchronous>, transform_indices = @transform_1, window_bounds = array<i64: 128, 128>}, {pipeline_mode = #tpu.pipeline_mode<synchronous>, transform_indices = @transform_2, window_bounds = array<i64: 1, 128>}, {pipeline_mode = #tpu.pipeline_mode<synchronous>, transform_indices = @transform_3, window_bounds = array<i64: 128, 4>}, {transform_indices = @transform_4, window_bounds = array<i64: 1>}, {transform_indices = @transform_5, window_bounds = array<i64: 8, 4>}]} {
    %c0 = arith.constant 0 : index
    %c0_0 = arith.constant 0 : index
    %0 = vector.load %arg1[%c0, %c0_0] : memref<8x128xf32, #tpu.memory_space<vmem>>, vector<8x128xf32>
    %c0_1 = arith.constant 0 : index
    %c0_2 = arith.constant 0 : index
    %1 = vector.load %arg2[%c0_1, %c0_2] : memref<128x128xf32, #tpu.memory_space<vmem>>, vector<128x128xf32>
    %cst = arith.constant dense<0.000000e+00> : vector<8x128xf32>
    %2 = tpu.matmul %0, %1, %cst {dimension_numbers = #tpu.dot_dimension_numbers<[1], [0], [0], [1], [0, 0, 1, 1], [], []>} : vector<8x128xf32>, vector<128x128xf32>, vector<8x128xf32> -> vector<8x128xf32>
    %c0_3 = arith.constant 0 : index
    %c0_4 = arith.constant 0 : index
    %3 = vector.load %arg3[%c0_3, %c0_4] : memref<1x128xf32, #tpu.memory_space<vmem>>, vector<1x128xf32>
    %4 = vector.broadcast %3 : vector<1x128xf32> to vector<8x128xf32>
    %5 = arith.addf %2, %4 : vector<8x128xf32>
    %cst_5 = arith.constant 0.000000e+00 : f32
    %6 = vector.broadcast %cst_5 : f32 to vector<8x128xf32>
    %7 = arith.maximumf %5, %6 : vector<8x128xf32>
    %c0_6 = arith.constant 0 : index
    %c0_7 = arith.constant 0 : index
    %8 = vector.load %arg4[%c0_6, %c0_7] : memref<128x4xf32, #tpu.memory_space<vmem>>, vector<128x4xf32>
    %cst_8 = arith.constant dense<0.000000e+00> : vector<8x4xf32>
    %9 = tpu.matmul %7, %8, %cst_8 {dimension_numbers = #tpu.dot_dimension_numbers<[1], [0], [0], [1], [0, 0, 1, 1], [], []>} : vector<8x128xf32>, vector<128x4xf32>, vector<8x4xf32> -> vector<8x4xf32>
    %c0_9 = arith.constant 0 : index
    %10 = memref.load %arg5[%c0_9] : memref<1xf32, #tpu.memory_space<smem>>
    %11 = vector.broadcast %10 : f32 to vector<8x4xf32>
    %12 = arith.addf %9, %11 : vector<8x4xf32>
    %c0_10 = arith.constant 0 : index
    %c0_11 = arith.constant 0 : index
    %13 = vector.load %arg6[%c0_10, %c0_11] : memref<8x4xf32, #tpu.memory_space<vmem>>, vector<8x4xf32>
    tpu.vector_store %arg6[%c0_10, %c0_11], %12 {strides = array<i32>} : memref<8x4xf32, #tpu.memory_space<vmem>>, vector<8x4xf32>,
    return
  }
  func.func @transform_0(%arg0: i32) -> (i32, i32) {
    %c0_i32 = arith.constant 0 : i32
    %c0_i32_0 = arith.constant 0 : i32
    return %arg0, %c0_i32 : i32, i32
  }
  func.func @transform_1(%arg0: i32) -> (i32, i32) {
    %c0_i32 = arith.constant 0 : i32
    %c0_i32_0 = arith.constant 0 : i32
    %c0_i32_1 = arith.constant 0 : i32
    return %c0_i32, %c0_i32_0 : i32, i32
  }
  func.func @transform_2(%arg0: i32) -> (i32, i32) {
    %c0_i32 = arith.constant 0 : i32
    %c0_i32_0 = arith.constant 0 : i32
    %c0_i32_1 = arith.constant 0 : i32
    return %c0_i32, %c0_i32_0 : i32, i32
  }
  func.func @transform_3(%arg0: i32) -> (i32, i32) {
    %c0_i32 = arith.constant 0 : i32
    %c0_i32_0 = arith.constant 0 : i32
    %c0_i32_1 = arith.constant 0 : i32
    return %c0_i32, %c0_i32_0 : i32, i32
  }
  func.func @transform_4(%arg0: i32) -> i32 {
    %c0_i32 = arith.constant 0 : i32
    %c0_i32_0 = arith.constant 0 : i32
    return %c0_i32 : i32
  }
  func.func @transform_5(%arg0: i32) -> (i32, i32) {
    %c0_i32 = arith.constant 0 : i32
    %c0_i32_0 = arith.constant 0 : i32
    return %arg0, %c0_i32 : i32, i32
  }
}

</mosaic_0001>

<llo_original>
// kernel: tpu_custom_call.1
$region0: #{tpu_custom_call.1}
  #allocation0 [shape = 'u32[]', space=smem, size = 0x4, offset = 0x4, fixed_abs, tag = 'smem constant byte address 0x4 - core index']
  #allocation1 [shape = 'u32[144,128]{1,0:T(1,128)}', space=vmem, size = 0x12000, scoped, tag = 'internal scratch']
  #allocation2 [shape = 'f32[1]{0:T(128)S(6)}', space=smem, size = 0x200, scoped, tag = 'scoped memory for tpu_custom_call.1']
  %s0 = inlined_call_operand.vmem [shape: f32[8,128], index: 0, kind: input, shape index: {}]
  %s1 = inlined_call_operand.vmem [shape: f32[128,128], index: 1, kind: input, shape index: {}]
  %s2 = inlined_call_operand.vmem [shape: f32[1,128], index: 2, kind: input, shape index: {}]
  %s3 = inlined_call_operand.vmem [shape: f32[128,4], index: 3, kind: input, shape index: {}]
  %s4 = inlined_call_operand.<no memory space> [shape: f32[1], index: 4, kind: input, shape index: {}]
  %s5 = inlined_call_operand.vmem [shape: f32[8,4], index: 5, kind: output, shape index: {}]
  %s6 = sld [smem:[#allocation0]]
  $region30: #{tpu_custom_call.1} parent=0
    _
  %s8 = ssub.s32 1, %s6
  %s9 = scalar_select 0, %s8, %s6
  %10 = sst [smem:[#allocation2]] %s4
  // Predicated region
  $region2: #{tpu_custom_call.1} parent=0 // pred_check
    _
  $region3: #{tpu_custom_call.1} parent=0 // pred_check_branch
    %12 = sbr.rel (0) target = $region5
  $region4: #{tpu_custom_call.1} parent=0 // pred_region
    _
  $region5: #{tpu_custom_call.1} parent=0 // pred_fallthru
    _
  // Predicated region
  $region6: #{tpu_custom_call.1} parent=0 // pred_check
    _
  $region7: #{tpu_custom_call.1} parent=0 // pred_check_branch
    %14 = sbr.rel (0) target = $region9
  $region8: #{tpu_custom_call.1} parent=0 // pred_region
    _
  $region9: #{tpu_custom_call.1} parent=0 // pred_fallthru
    _
  // Predicated region
  $region10: #{tpu_custom_call.1} parent=0 // pred_check
    _
  $region11: #{tpu_custom_call.1} parent=0 // pred_check_branch
    %16 = sbr.rel (0) target = $region13
  $region12: #{tpu_custom_call.1} parent=0 // pred_region
    _
  $region13: #{tpu_custom_call.1} parent=0 // pred_fallthru
    _
  // Predicated region
  $region14: #{tpu_custom_call.1} parent=0 // pred_check
    _
  $region15: #{tpu_custom_call.1} parent=0 // pred_check_branch
    %18 = sbr.rel (0) target = $region17
  $region16: #{tpu_custom_call.1} parent=0 // pred_region
    _
  $region17: #{tpu_custom_call.1} parent=0 // pred_fallthru
    _
  // Predicated region
  $region18: #{tpu_custom_call.1} parent=0 // pred_check
    _
  $region19: #{tpu_custom_call.1} parent=0 // pred_check_branch
    %20 = sbr.rel (0) target = $region21
  $region20: #{tpu_custom_call.1} parent=0 // pred_region
    _
  $region21: #{tpu_custom_call.1} parent=0 // pred_fallthru
    _
  %v21 = vld [vmem:[%s0] sm:$0xff]
  %v22 = vld [vmem:[%s1] sm:$0xff]
  %v23 = vld [vmem:[%s1 + $0x8] sm:$0xff]
  %v24 = vld [vmem:[%s1 + $0x10] sm:$0xff]
  %v25 = vld [vmem:[%s1 + $0x18] sm:$0xff]
  %v26 = vld [vmem:[%s1 + $0x20] sm:$0xff]
  %v27 = vld [vmem:[%s1 + $0x28] sm:$0xff]
  %v28 = vld [vmem:[%s1 + $0x30] sm:$0xff]
  %v29 = vld [vmem:[%s1 + $0x38] sm:$0xff]
  %v30 = vld [vmem:[%s1 + $0x40] sm:$0xff]
  %v31 = vld [vmem:[%s1 + $0x48] sm:$0xff]
  %v32 = vld [vmem:[%s1 + $0x50] sm:$0xff]
  %v33 = vld [vmem:[%s1 + $0x58] sm:$0xff]
  %v34 = vld [vmem:[%s1 + $0x60] sm:$0xff]
  %v35 = vld [vmem:[%s1 + $0x68] sm:$0xff]
  %v36 = vld [vmem:[%s1 + $0x70] sm:$0xff]
  %v37 = vld [vmem:[%s1 + $0x78] sm:$0xff]
  %v38 = vld [vmem:[%s2] sm:$0x1]
  %v40 = vlaneseq
  %v41 = vshrl.u32 %v40, 7
  %v42 = vsub.s32 0, %v41
  %v43 = vrot.slane %v38, %v42
  %45 = vmatprep.subr.mxu0 0.0
  %46 = vmatpush1.msra.mxu0 %v22
  %47 = vmatprep.subr.mxu0 0.0
  %48 = vmatpush1.msra.mxu0 %v23
  %49 = vmatprep.subr.mxu0 0.0
  %50 = vmatpush1.msra.mxu0 %v24
  %51 = vmatprep.subr.mxu0 0.0
  %52 = vmatpush1.msra.mxu0 %v25
  %53 = vmatprep.subr.mxu0 0.0
  %54 = vmatpush1.msra.mxu0 %v26
  %55 = vmatprep.subr.mxu0 0.0
  %56 = vmatpush1.msra.mxu0 %v27
  %57 = vmatprep.subr.mxu0 0.0
  %58 = vmatpush1.msra.mxu0 %v28
  %59 = vmatprep.subr.mxu0 0.0
  %60 = vmatpush1.msra.mxu0 %v29
  %61 = vmatprep.subr.mxu0 0.0
  %62 = vmatpush1.msra.mxu0 %v30
  %63 = vmatprep.subr.mxu0 0.0
  %64 = vmatpush1.msra.mxu0 %v31
  %65 = vmatprep.subr.mxu0 0.0
  %66 = vmatpush1.msra.mxu0 %v32
  %67 = vmatprep.subr.mxu0 0.0
  %68 = vmatpush1.msra.mxu0 %v33
  %69 = vmatprep.subr.mxu0 0.0
  %70 = vmatpush1.msra.mxu0 %v34
  %71 = vmatprep.subr.mxu0 0.0
  %72 = vmatpush1.msra.mxu0 %v35
  %73 = vmatprep.subr.mxu0 0.0
  %74 = vmatpush1.msra.mxu0 %v36
  %75 = vmatprep.subr.mxu0 0.0
  %76 = vmatpush1.msra.mxu0 %v37
  %77 = vmatprep.subr.mxu0 0.0
  %78 = vmatpush1.msra.mxu0 0.0
  %79 = vmatprep.subr.mxu0 0.0
  %80 = vmatpush1.msra.mxu0 0.0
  %81 = vmatprep.subr.mxu0 0.0
  %82 = vmatpush1.msra.mxu0 0.0
  %83 = vmatprep.subr.mxu0 0.0
  %84 = vmatpush1.msra.mxu0 0.0
  %85 = vmatprep.subr.mxu0 0.0
  %86 = vmatpush1.msra.mxu0 0.0
  %87 = vmatprep.subr.mxu0 0.0
  %88 = vmatpush1.msra.mxu0 0.0
  %89 = vmatprep.subr.mxu0 0.0
  %90 = vmatpush1.msra.mxu0 0.0
  %91 = vmatprep.subr.mxu0 0.0
  %92 = vmatpush1.msra.mxu0 0.0
  %93 = vmatprep.subr.mxu0 0.0
  %94 = vmatpush1.msra.mxu0 0.0
  %95 = vmatprep.subr.mxu0 0.0
  %96 = vmatpush1.msra.mxu0 0.0
  %97 = vmatprep.subr.mxu0 0.0
  %98 = vmatpush1.msra.mxu0 0.0
  %99 = vmatprep.subr.mxu0 0.0
  %100 = vmatpush1.msra.mxu0 0.0
  %101 = vmatprep.subr.mxu0 0.0
  %102 = vmatpush1.msra.mxu0 0.0
  %103 = vmatprep.subr.mxu0 0.0
  %104 = vmatpush1.msra.mxu0 0.0
  %105 = vmatprep.subr.mxu0 0.0
  %106 = vmatpush1.msra.mxu0 0.0
  %107 = vmatprep.subr.mxu0 0.0
  %108 = vmatpush1.msra.mxu0 0.0
  %109 = vmatprep.mubr.f32.mxu0 0.0
  %110 = vmatmul.mubr.f32.gmra.mrb[0].mxu0 %v21
  %v111 = vpop.f32.mrb[0].mxu0
  %v112 = vadd.f32 %v43, %v111
  %v113 = vpop.f32.mrb[0].mxu0
  %114 = vdwg.mxu0
  %v115 = vmax.f32 %v112, 0.0
  %v116 = vld [vmem:[%s3] sm:$0xff]
  %v117 = vld [vmem:[%s3 + $0x8] sm:$0xff]
  %v118 = vld [vmem:[%s3 + $0x10] sm:$0xff]
  %v119 = vld [vmem:[%s3 + $0x18] sm:$0xff]
  %v120 = vld [vmem:[%s3 + $0x20] sm:$0xff]
  %v121 = vld [vmem:[%s3 + $0x28] sm:$0xff]
  %v122 = vld [vmem:[%s3 + $0x30] sm:$0xff]
  %v123 = vld [vmem:[%s3 + $0x38] sm:$0xff]
  %v124 = vld [vmem:[%s3 + $0x40] sm:$0xff]
  %v125 = vld [vmem:[%s3 + $0x48] sm:$0xff]
  %v126 = vld [vmem:[%s3 + $0x50] sm:$0xff]
  %v127 = vld [vmem:[%s3 + $0x58] sm:$0xff]
  %v128 = vld [vmem:[%s3 + $0x60] sm:$0xff]
  %v129 = vld [vmem:[%s3 + $0x68] sm:$0xff]
  %v130 = vld [vmem:[%s3 + $0x70] sm:$0xff]
  %v131 = vld [vmem:[%s3 + $0x78] sm:$0xff]
  %s132 = sld [smem:[#allocation2]]
  %v133 = vstv %s132
  %134 = vmatprep.subr.mxu0 0.0
  %135 = vmatpush1.msra.mxu0 %v116
  %136 = vmatprep.subr.mxu0 0.0
  %137 = vmatpush1.msra.mxu0 %v117
  %138 = vmatprep.subr.mxu0 0.0
  %139 = vmatpush1.msra.mxu0 %v118
  %140 = vmatprep.subr.mxu0 0.0
  %141 = vmatpush1.msra.mxu0 %v119
  %142 = vmatprep.subr.mxu0 0.0
  %143 = vmatpush1.msra.mxu0 %v120
  %144 = vmatprep.subr.mxu0 0.0
  %145 = vmatpush1.msra.mxu0 %v121
  %146 = vmatprep.subr.mxu0 0.0
  %147 = vmatpush1.msra.mxu0 %v122
  %148 = vmatprep.subr.mxu0 0.0
  %149 = vmatpush1.msra.mxu0 %v123
  %150 = vmatprep.subr.mxu0 0.0
  %151 = vmatpush1.msra.mxu0 %v124
  %152 = vmatprep.subr.mxu0 0.0
  %153 = vmatpush1.msra.mxu0 %v125
  %154 = vmatprep.subr.mxu0 0.0
  %155 = vmatpush1.msra.mxu0 %v126
  %156 = vmatprep.subr.mxu0 0.0
  %157 = vmatpush1.msra.mxu0 %v127
  %158 = vmatprep.subr.mxu0 0.0
  %159 = vmatpush1.msra.mxu0 %v128
  %160 = vmatprep.subr.mxu0 0.0
  %161 = vmatpush1.msra.mxu0 %v129
  %162 = vmatprep.subr.mxu0 0.0
  %163 = vmatpush1.msra.mxu0 %v130
  %164 = vmatprep.subr.mxu0 0.0
  %165 = vmatpush1.msra.mxu0 %v131
  %166 = vmatprep.subr.mxu0 0.0
  %167 = vmatpush1.msra.mxu0 0.0
  %168 = vmatprep.subr.mxu0 0.0
  %169 = vmatpush1.msra.mxu0 0.0
  %170 = vmatprep.subr.mxu0 0.0
  %171 = vmatpush1.msra.mxu0 0.0
  %172 = vmatprep.subr.mxu0 0.0
  %173 = vmatpush1.msra.mxu0 0.0
  %174 = vmatprep.subr.mxu0 0.0
  %175 = vmatpush1.msra.mxu0 0.0
  %176 = vmatprep.subr.mxu0 0.0
  %177 = vmatpush1.msra.mxu0 0.0
  %178 = vmatprep.subr.mxu0 0.0
  %179 = vmatpush1.msra.mxu0 0.0
  %180 = vmatprep.subr.mxu0 0.0
  %181 = vmatpush1.msra.mxu0 0.0
  %182 = vmatprep.subr.mxu0 0.0
  %183 = vmatpush1.msra.mxu0 0.0
  %184 = vmatprep.subr.mxu0 0.0
  %185 = vmatpush1.msra.mxu0 0.0
  %186 = vmatprep.subr.mxu0 0.0
  %187 = vmatpush1.msra.mxu0 0.0
  %188 = vmatprep.subr.mxu0 0.0
  %189 = vmatpush1.msra.mxu0 0.0
  %190 = vmatprep.subr.mxu0 0.0
  %191 = vmatpush1.msra.mxu0 0.0
  %192 = vmatprep.subr.mxu0 0.0
  %193 = vmatpush1.msra.mxu0 0.0
  %194 = vmatprep.subr.mxu0 0.0
  %195 = vmatpush1.msra.mxu0 0.0
  %196 = vmatprep.subr.mxu0 0.0
  %197 = vmatpush1.msra.mxu0 0.0
  %198 = vmatprep.mubr.f32.mxu0 0.0
  %199 = vmatmul.mubr.f32.gmra.mrb[0].mxu0 %v115
  %v200 = vpop.f32.mrb[0].mxu0
  %v201 = vadd.f32 %v133, %v200
  %v202 = vpop.f32.mrb[0].mxu0
  %203 = vdwg.mxu0
  %vm204 = vcmask 31744
  %205 = vst.msk [vmem:[%s5] sm:$0xff] %vm204, %v201
  // Predicated region
  $region22: #{tpu_custom_call.1} parent=0 // pred_check
    _
  $region23: #{tpu_custom_call.1} parent=0 // pred_check_branch
    %207 = sbr.rel (0) target = $region25
  $region24: #{tpu_custom_call.1} parent=0 // pred_region
    _
  $region25: #{tpu_custom_call.1} parent=0 // pred_fallthru
    _
  // Predicated region
  $region26: #{tpu_custom_call.1} parent=0 // pred_check
    _
  $region27: #{tpu_custom_call.1} parent=0 // pred_check_branch
    %209 = sbr.rel (0) target = $region29
  $region28: #{tpu_custom_call.1} parent=0 // pred_region
    _
  $region29: #{tpu_custom_call.1} parent=0 // pred_fallthru
    _

</llo_original>
